<compile_context>
chip_gen: v5e
topology: v5e:2x2
jax: 0.10.0
libtpu: 0.0.40
codegen_flags: <defaults>
</compile_context>

<pallas_src>
import jax
import jax.numpy as jnp
import numpy as np
from jax.experimental import pallas as pl
from jax.experimental.pallas import tpu as pltpu


def _unpool_zero_idx_kernel(x_ref, o_ref):
    # x_ref: (RB, H*W)   -- RB flattened input planes (row-major over h, w)
    # o_ref: (RB, OH*OW) -- RB flattened output planes
    hw = x_ref.shape[1]
    xv = x_ref[...]
    corner = xv[:, hw - 1:hw]                                   # (RB, 1) == x[.., H-1, W-1]
    col = jax.lax.broadcasted_iota(jnp.int32, o_ref.shape, 1)   # flat output position
    o_ref[...] = jnp.where(col == 0, corner, jnp.zeros_like(corner)).astype(o_ref.dtype)


def _pick_row_block(nc, hw, ohw, itemsize, target_bytes=2 << 20):
    """Largest multiple-of-8 divisor of nc whose (input + output) block fits target_bytes."""
    if nc % 8 != 0:
        return nc  # full extent is always a legal block shape
    per_row = (hw + ohw) * itemsize
    best = 8
    for rb in range(8, nc + 1, 8):
        if nc % rb == 0 and rb * per_row <= target_bytes:
            best = rb
    return best


def simple_max_unpool2d(x):
    """nn.MaxUnpool2d(2, stride=2) with all-zero indices. x: (N, C, H, W) -> (N, C, 2H, 2W)."""
    N, C, H, W = x.shape
    OH, OW = 2 * H, 2 * W
    NC, HW, OHW = N * C, H * W, OH * OW

    # Layout plumbing (contiguous reshapes, no data movement): lane-dense 2-D slabs.
    x2 = x.reshape(NC, HW)
    rb = _pick_row_block(NC, HW, OHW, x.dtype.itemsize)

    out2 = pl.pallas_call(
        _unpool_zero_idx_kernel,
        out_shape=jax.ShapeDtypeStruct((NC, OHW), x.dtype),
        grid=(NC // rb,),
        in_specs=[pl.BlockSpec((rb, HW), lambda i: (i, 0))],
        out_specs=pl.BlockSpec((rb, OHW), lambda i: (i, 0)),
        compiler_params=pltpu.CompilerParams(dimension_semantics=("parallel",)),
    )(x2)
    return out2.reshape(N, C, OH, OW)


if __name__ == "__main__":
    key = jax.random.PRNGKey(0)
    N, C, H, W = 2, 4, 16, 16
    x = jax.random.normal(key, (N, C, H, W), dtype=jnp.float32)

    out = jax.block_until_ready(simple_max_unpool2d(x))

    # Reference: all indices == 0 -> only out[..., 0, 0] is written; last row-major write
    # wins, i.e. out[n, c, 0, 0] == x[n, c, H-1, W-1]; everything else is 0.
    expected = np.zeros((N, C, 2 * H, 2 * W), dtype=np.float32)
    expected[:, :, 0, 0] = np.asarray(x)[:, :, -1, -1]
    np.testing.assert_allclose(np.asarray(out), expected, rtol=1e-6, atol=1e-6)

    print("KERNEL_OK")
</pallas_src>

<mosaic_0001>
module attributes {stable_mosaic.version = 11 : i64} {
  func.func @_unpool_zero_idx_kernel(%arg0: i32, %arg1: memref<8x256xf32, #tpu.memory_space<vmem>>, %arg2: memref<8x1024xf32, #tpu.memory_space<vmem>>) attributes {dimension_semantics = [#tpu.dimension_semantics<parallel>], iteration_bounds = array<i64: 1>, scalar_prefetch = 0 : i64, scratch_operands = 0 : i64, tpu.core_type = #tpu.core_type<tc>, window_params = [{transform_indices = @transform_0, window_bounds = array<i64: 8, 256>}, {transform_indices = @transform_1, window_bounds = array<i64: 8, 1024>}]} {
    %c0 = arith.constant 0 : index
    %c0_0 = arith.constant 0 : index
    %0 = vector.load %arg1[%c0, %c0_0] : memref<8x256xf32, #tpu.memory_space<vmem>>, vector<8x256xf32>
    %1 = vector.extract_strided_slice %0 {offsets = [0, 255], sizes = [8, 1], strides = [1, 1]} : vector<8x256xf32> to vector<8x1xf32>
    %2 = tpu.iota {dimensions = array<i32: 1>} : vector<8x1024xi32>
    %c0_i32 = arith.constant 0 : i32
    %3 = vector.broadcast %c0_i32 : i32 to vector<8x1024xi32>
    %4 = arith.cmpi eq, %2, %3 : vector<8x1024xi32>
    %cst = arith.constant 0.000000e+00 : f32
    %5 = vector.broadcast %cst : f32 to vector<8x1xf32>
    %6 = vector.shape_cast %1 : vector<8x1xf32> to vector<8x1xf32>
    %7 = vector.broadcast %6 : vector<8x1xf32> to vector<8x1024xf32>
    %8 = vector.shape_cast %5 : vector<8x1xf32> to vector<8x1xf32>
    %9 = vector.broadcast %8 : vector<8x1xf32> to vector<8x1024xf32>
    %10 = arith.select %4, %7, %9 : vector<8x1024xi1>, vector<8x1024xf32>
    %c0_1 = arith.constant 0 : index
    %c0_2 = arith.constant 0 : index
    %11 = vector.load %arg2[%c0_1, %c0_2] : memref<8x1024xf32, #tpu.memory_space<vmem>>, vector<8x1024xf32>
    tpu.vector_store %arg2[%c0_1, %c0_2], %10 {strides = array<i32>} : memref<8x1024xf32, #tpu.memory_space<vmem>>, vector<8x1024xf32>,
    return
  }
  func.func @transform_0(%arg0: i32) -> (i32, i32) {
    %c0_i32 = arith.constant 0 : i32
    %c0_i32_0 = arith.constant 0 : i32
    return %arg0, %c0_i32 : i32, i32
  }
  func.func @transform_1(%arg0: i32) -> (i32, i32) {
    %c0_i32 = arith.constant 0 : i32
    %c0_i32_0 = arith.constant 0 : i32
    return %arg0, %c0_i32 : i32, i32
  }
}

</mosaic_0001>

<llo_original>
// kernel: tpu_custom_call.1
$region0: #{tpu_custom_call.1}
  #allocation0 [shape = 'u32[]', space=smem, size = 0x4, offset = 0x4, fixed_abs, tag = 'smem constant byte address 0x4 - core index']
  #allocation1 [shape = 'u32[72,128]{1,0:T(1,128)}', space=vmem, size = 0x9000, scoped, tag = 'internal scratch']
  %s0 = inlined_call_operand.hbm [shape: f32[8,256], index: 0, kind: input, shape index: {}]
  %s1 = inlined_call_operand.hbm [shape: f32[8,1024], index: 1, kind: output, shape index: {}]
  %s2 = sld [smem:[#allocation0]]
  $region18: #{tpu_custom_call.1} parent=0
    _
  %s4 = ssub.s32 1, %s2
  %s5 = scalar_select 0, %s4, %s2
  $region1: #{tpu_custom_call.1} parent=0
    #allocation2 [shape = 'u8[8192]{0}', space=vmem, size = 0x2000, scoped, tag = 'input window, operand 0, single buffered']
    #allocation3 [shape = 's32[1]{0}', space=sflag, size = 0x4, scoped, tag = 'scoped memory for tpu_custom_call.1']
    #allocation4 [shape = 's32[1]{0}', space=sflag, size = 0x4, scoped, tag = 'scoped memory for tpu_custom_call.1']
    #allocation5 [shape = 'u8[32768]{0}', space=vmem, size = 0x8000, scoped, tag = 'output window, operand 0, single buffered']
    %6 = vsyncpa [#allocation3], 0
    %7 = vsyncpa [#allocation4], 0
    // Predicated region
    $region2: #{tpu_custom_call.1} parent=1 // pred_check
      _
    $region3: #{tpu_custom_call.1} parent=1 // pred_check_branch
      %9 = sbr.rel (0) target = $region5
    $region4: #{tpu_custom_call.1} parent=1 // pred_region
      %11 = vsyncadd [#allocation3], 0
      %s13 = sshll.u32 %s0, 4
      %s14 = int_to_ptr.hbm [resolvable:$true] %s13
      %s15 = sshll.u32 [#allocation2], 4
      %s16 = int_to_ptr.vmem [resolvable:$true] %s15
      %18 = dma.hbm_to_vmem [thread:$0]  %s14, 256, %s16, [#allocation3]
    $region5: #{tpu_custom_call.1} parent=1 // pred_fallthru
      _
    // Predicated region
    $region6: #{tpu_custom_call.1} parent=1 // pred_check
      _
    $region7: #{tpu_custom_call.1} parent=1 // pred_check_branch
      %20 = sbr.rel (0) target = $region9
    $region8: #{tpu_custom_call.1} parent=1 // pred_region
      %22 = dma.done [#allocation3], 256
    $region9: #{tpu_custom_call.1} parent=1 // pred_fallthru
      _
    %v23 = vld [vmem:[#allocation2 + $0x8] sm:$0xff]
    %v24 = vlaneseq
    %v25 = vand.u32 %v24, 127
    %v26 = vadd.s32 %v25, 128
    %v27 = vadd.s32 %v25, 256
    %v28 = vadd.s32 %v25, 384
    %v29 = vadd.s32 %v25, 512
    %v30 = vadd.s32 %v25, 640
    %v31 = vadd.s32 %v25, 768
    %v32 = vadd.s32 %v25, 896
    %vm33 = vcmp.eq.s32.totalorder %v25, 0
    %vm34 = vcmp.eq.s32.totalorder %v26, 0
    %vm35 = vcmp.eq.s32.totalorder %v27, 0
    %vm36 = vcmp.eq.s32.totalorder %v28, 0
    %vm37 = vcmp.eq.s32.totalorder %v29, 0
    %vm38 = vcmp.eq.s32.totalorder %v30, 0
    %vm39 = vcmp.eq.s32.totalorder %v31, 0
    %vm40 = vcmp.eq.s32.totalorder %v32, 0
    %42 = vset.pattern.permute.xlu0 127
    %43 = vperm.xlu0 %42, %v23
    %v44 = vpop.permute.xlu0 %43
    %v46 = vsel %vm33, %v44, 0.0
    %v47 = vsel %vm34, %v44, 0.0
    %v48 = vsel %vm35, %v44, 0.0
    %v49 = vsel %vm36, %v44, 0.0
    %v50 = vsel %vm37, %v44, 0.0
    %v51 = vsel %vm38, %v44, 0.0
    %v52 = vsel %vm39, %v44, 0.0
    %v53 = vsel %vm40, %v44, 0.0
    %54 = vst [vmem:[#allocation5] sm:$0xff] %v46
    %55 = vst [vmem:[#allocation5 + $0x8] sm:$0xff] %v47
    %56 = vst [vmem:[#allocation5 + $0x10] sm:$0xff] %v48
    %57 = vst [vmem:[#allocation5 + $0x18] sm:$0xff] %v49
    %58 = vst [vmem:[#allocation5 + $0x20] sm:$0xff] %v50
    %59 = vst [vmem:[#allocation5 + $0x28] sm:$0xff] %v51
    %60 = vst [vmem:[#allocation5 + $0x30] sm:$0xff] %v52
    %61 = vst [vmem:[#allocation5 + $0x38] sm:$0xff] %v53
    // Predicated region
    $region10: #{tpu_custom_call.1} parent=1 // pred_check
      _
    $region11: #{tpu_custom_call.1} parent=1 // pred_check_branch
      %63 = sbr.rel (0) target = $region13
    $region12: #{tpu_custom_call.1} parent=1 // pred_region
      %65 = vsyncadd [#allocation4], 0
      %s67 = sshll.u32 [#allocation5], 4
      %s68 = int_to_ptr.vmem [resolvable:$true] %s67
      %s69 = sshll.u32 %s1, 4
      %s70 = int_to_ptr.hbm [resolvable:$true] %s69
      %72 = dma.vmem_to_hbm [thread:$0]  %s68, 1024, %s70, [#allocation4]
    $region13: #{tpu_custom_call.1} parent=1 // pred_fallthru
      _
    // Predicated region
    $region14: #{tpu_custom_call.1} parent=1 // pred_check
      _
    $region15: #{tpu_custom_call.1} parent=1 // pred_check_branch
      %74 = sbr.rel (0) target = $region17
    $region16: #{tpu_custom_call.1} parent=1 // pred_region
      %76 = dma.done [#allocation4], 1024
    $region17: #{tpu_custom_call.1} parent=1 // pred_fallthru
      _
    %77 = vsyncpa [#allocation3], 1
    %78 = vsyncpa [#allocation4], 1

</llo_original>
